<compile_context>
chip_gen: v7x
topology: tpu7x:2x2x1
jax: 0.10.0
libtpu: 0.0.40
codegen_flags: <defaults>
</compile_context>

<pallas_src>
import math

import jax
import jax.numpy as jnp
from jax.experimental import pallas as pl
from jax.experimental.pallas import tpu as pltpu

LANE_COLS = 512     # lane-dense last dim (multiple of 128)
BLOCK_ROWS = 256    # sublane tile (multiple of 8)


def sinc_act_kernel(x_ref, o_ref):
    x = x_ref[...].astype(jnp.float32)
    o_ref[...] = jnp.log10(jnp.abs(x) + 1.0).astype(o_ref.dtype)


def sinc_act(x):
    """y = log10(|x| + 1), elementwise; same shape and dtype as x."""
    orig_shape = x.shape
    orig_dtype = x.dtype
    flat = x.reshape(-1)
    n = flat.shape[0]

    block_elems = BLOCK_ROWS * LANE_COLS
    num_blocks = max(1, math.ceil(n / block_elems))
    total = num_blocks * block_elems
    if total != n:
        flat = jnp.pad(flat, (0, total - n))
    x2d = flat.reshape(num_blocks * BLOCK_ROWS, LANE_COLS)

    out2d = pl.pallas_call(
        sinc_act_kernel,
        out_shape=jax.ShapeDtypeStruct(x2d.shape, orig_dtype),
        grid=(num_blocks,),
        in_specs=[pl.BlockSpec((BLOCK_ROWS, LANE_COLS), lambda i: (i, 0))],
        out_specs=pl.BlockSpec((BLOCK_ROWS, LANE_COLS), lambda i: (i, 0)),
        compiler_params=pltpu.CompilerParams(
            dimension_semantics=("parallel",)),
    )(x2d)

    return out2d.reshape(-1)[:n].reshape(orig_shape)


if __name__ == "__main__":
    key = jax.random.PRNGKey(0)
    # Shape consistent with where Sinc_Act sits in SincConvBlock:
    # the output of SincConv1d is (batch, 40 sinc channels, time).
    B, C, T = 2, 40, 3200
    x = jax.random.normal(key, (B, C, T), dtype=jnp.float32) * 5.0

    out = jax.block_until_ready(sinc_act(x))

    ref = jnp.log10(jnp.abs(x) + 1.0)
    assert out.shape == x.shape, out.shape
    assert out.dtype == x.dtype, out.dtype
    assert bool(jnp.all(jnp.isfinite(out)))
    assert bool(jnp.allclose(out, ref, atol=1e-5, rtol=1e-5))
    print("KERNEL_OK")
</pallas_src>

<mosaic_0001>
module attributes {stable_mosaic.version = 11 : i64} {
  func.func @sinc_act_kernel(%arg0: i32, %arg1: memref<256x512xf32, #tpu.memory_space<vmem>>, %arg2: memref<256x512xf32, #tpu.memory_space<vmem>>) attributes {dimension_semantics = [#tpu.dimension_semantics<parallel>], iteration_bounds = array<i64: 2>, scalar_prefetch = 0 : i64, scratch_operands = 0 : i64, tpu.core_type = #tpu.core_type<tc>, window_params = [{transform_indices = @transform_0, window_bounds = array<i64: 256, 512>}, {transform_indices = @transform_1, window_bounds = array<i64: 256, 512>}]} {
    %c0 = arith.constant 0 : index
    %c0_0 = arith.constant 0 : index
    %0 = vector.load %arg1[%c0, %c0_0] : memref<256x512xf32, #tpu.memory_space<vmem>>, vector<256x512xf32>
    %1 = math.absf %0 : vector<256x512xf32>
    %cst = arith.constant 1.000000e+00 : f32
    %2 = vector.broadcast %cst : f32 to vector<256x512xf32>
    %3 = arith.addf %1, %2 : vector<256x512xf32>
    %4 = math.log %3 : vector<256x512xf32>
    %cst_1 = arith.constant 0.434294492 : f32
    %5 = vector.broadcast %cst_1 : f32 to vector<256x512xf32>
    %6 = arith.mulf %4, %5 : vector<256x512xf32>
    %c0_2 = arith.constant 0 : index
    %c0_3 = arith.constant 0 : index
    %7 = vector.load %arg2[%c0_2, %c0_3] : memref<256x512xf32, #tpu.memory_space<vmem>>, vector<256x512xf32>
    tpu.vector_store %arg2[%c0_2, %c0_3], %6 {strides = array<i32>} : memref<256x512xf32, #tpu.memory_space<vmem>>, vector<256x512xf32>,
    return
  }
  func.func @transform_0(%arg0: i32) -> (i32, i32) {
    %c0_i32 = arith.constant 0 : i32
    %c0_i32_0 = arith.constant 0 : i32
    return %arg0, %c0_i32 : i32, i32
  }
  func.func @transform_1(%arg0: i32) -> (i32, i32) {
    %c0_i32 = arith.constant 0 : i32
    %c0_i32_0 = arith.constant 0 : i32
    return %arg0, %c0_i32 : i32, i32
  }
}

</mosaic_0001>

<llo_original>
// kernel: tpu_custom_call.1
$region0: #{tpu_custom_call.1}
  #allocation0 [shape = 'u32[]', space=smem, size = 0x4, offset = 0x4, fixed_abs, tag = 'smem constant byte address 0x4 - core index']
  #allocation1 [shape = 'u32[144,128]{1,0:T(1,128)}', space=vmem, size = 0x12000, scoped, tag = 'internal scratch']
  %s0 = inlined_call_operand.hbm [shape: f32[512,512], index: 0, kind: input, shape index: {}]
  %s1 = inlined_call_operand.hbm [shape: f32[512,512], index: 1, kind: output, shape index: {}]
  %s2 = sld [smem:[#allocation0]]
  $region41: #{tpu_custom_call.1} parent=0
    _
  %s4 = ssub.s32 1, %s2
  %s5 = scalar_select 0, %s4, %s2
  $region1: #{tpu_custom_call.1} parent=0
    #allocation2 [shape = 'u8[1048576]{0}', space=vmem, size = 0x100000, scoped, tag = 'input window, operand 0']
    #allocation3 [shape = 's32[2]{0}', space=sflag, size = 0x8, scoped, tag = 'scoped memory for tpu_custom_call.1']
    #allocation4 [shape = 's32[2]{0}', space=sflag, size = 0x8, scoped, tag = 'scoped memory for tpu_custom_call.1']
    #allocation5 [shape = 'u8[1048576]{0}', space=vmem, size = 0x100000, scoped, tag = 'output window, operand 0']
    %6 = vsyncpa [#allocation3], 0
    %s7 = scalar_lea.sflag [#allocation3], 1
    %8 = vsyncpa %s7, 0
    %9 = vsyncpa [#allocation4], 0
    %s10 = scalar_lea.sflag [#allocation4], 1
    %11 = vsyncpa %s10, 0
    loop: start=0, step=1, limit=4
    $region2: #{tpu_custom_call.1} parent=1 // loop_pre_header
      _
    $region3: #{tpu_custom_call.1} parent=1 // loop_header
      %s13 = sphi 0, %s17
      %p14 = scmp.ge.s32.totalorder %s13, 4
      %s23 = sphi 0, %s25
      %s26 = sphi 0, %s23
      %s27 = sphi 0, %s26
      %s43 = sphi 0, %s27
      %s49 = sphi 0, %s51
      %s52 = sphi 0, %s49
      %s53 = sphi 0, %s52
      %s69 = sphi 0, %s53
    $region4: #{tpu_custom_call.1} parent=1 // loop_header_branch
      %16 = sbr.rel (%p14) target = $region8
    $region5: #{tpu_custom_call.1} parent=1 // loop_body
      %s18 = ssub.s32 %s13, 1
      %s19 = ssub.s32 %s13, 2
      %s20 = sadd.s32 %s13, 1
      %s21 = ssub.s32 %s13, %s20
      %p22 = scmp.eq.s32.totalorder %s21, 0
      %s24 = sadd.s32 %s23, 1
      %s25 = scalar_select %p22, %s23, %s24
      %p28 = pneg %p22
      %p29 = scmp.eq.s32.totalorder %s13, 1
      %p30 = por %p28, %p29
      %p31 = scmp.ne.s32.totalorder %s23, %s26
      %p32 = scmp.eq.s32.totalorder %s13, 0
      %p33 = por %p31, %p32
      %p34 = scmp.ne.s32.totalorder %s23, %s26
      %p35 = scmp.eq.s32.totalorder %s18, 1
      %p36 = por %p34, %p35
      %p37 = scmp.ne.s32.totalorder %s26, %s27
      %p38 = scmp.eq.s32.totalorder %s18, 0
      %p39 = por %p37, %p38
      %p40 = scmp.ne.s32.totalorder %s26, %s27
      %p41 = scmp.eq.s32.totalorder %s19, 1
      %p42 = por %p40, %p41
      %p44 = scmp.ne.s32.totalorder %s27, %s43
      %p45 = scmp.eq.s32.totalorder %s19, 0
      %p46 = por %p44, %p45
      %s47 = ssub.s32 %s13, %s20
      %p48 = scmp.eq.s32.totalorder %s47, 0
      %s50 = sadd.s32 %s49, 1
      %s51 = scalar_select %p48, %s49, %s50
      %p54 = pneg %p48
      %p55 = scmp.eq.s32.totalorder %s13, 1
      %p56 = por %p54, %p55
      %p57 = scmp.ne.s32.totalorder %s49, %s52
      %p58 = scmp.eq.s32.totalorder %s13, 0
      %p59 = por %p57, %p58
      %p60 = scmp.ne.s32.totalorder %s49, %s52
      %p61 = scmp.eq.s32.totalorder %s18, 1
      %p62 = por %p60, %p61
      %p63 = scmp.ne.s32.totalorder %s52, %s53
      %p64 = scmp.eq.s32.totalorder %s18, 0
      %p65 = por %p63, %p64
      %p66 = scmp.ne.s32.totalorder %s52, %s53
      %p67 = scmp.eq.s32.totalorder %s19, 1
      %p68 = por %p66, %p67
      %p70 = scmp.ne.s32.totalorder %s53, %s69
      %p71 = scmp.eq.s32.totalorder %s19, 0
      %p72 = por %p70, %p71
      %p73 = scmp.le.s32.totalorder 1, %s13
      %p74 = scmp.lt.s32.totalorder %s13, 3
      %p75 = pnand %p73, %p74
      %p76 = pneg %p75
      // Predicated region
      $region9: #{tpu_custom_call.1} parent=5 // pred_check
        _
      $region10: #{tpu_custom_call.1} parent=5 // pred_check_branch
        %78 = sbr.rel (%p75) target = $region12
      $region11: #{tpu_custom_call.1} parent=5 // pred_region
        %s79 = ssub.s32 %s13, 1
      $region12: #{tpu_custom_call.1} parent=5 // pred_fallthru
        _
      %p80 = scmp.lt.s32.totalorder %s13, 2
      // Predicated region
      $region13: #{tpu_custom_call.1} parent=5 // pred_check
        %p81 = pneg %p80
      $region14: #{tpu_custom_call.1} parent=5 // pred_check_branch
        %83 = sbr.rel (%p81) target = $region16
      $region15: #{tpu_custom_call.1} parent=5 // pred_region
        // Predicated region
        $region17: #{tpu_custom_call.1} parent=15 // pred_check
          %p84 = pneg %p33
        $region18: #{tpu_custom_call.1} parent=15 // pred_check_branch
          %86 = sbr.rel (%p84) target = $region20
        $region19: #{tpu_custom_call.1} parent=15 // pred_region
          %s87 = sand.u32 %s23, 1
          %s88 = scalar_lea.sflag [#allocation3], %s87
          %s89 = sand.u32 %s23, 1
          %s90 = smul.addr %s89, 1024
          %s91 = scalar_lea.vmem [#allocation2], %s90
          %s92 = smul.u32 32, %s13
          %s94 = ssub.s32 16384, 16384
          %95 = vsyncadd %s88, %s94
          %s96 = smul.addr %s92, 4
          %s97 = smul.addr %s96, 128
          %s98 = scalar_lea.hbm %s0, %s97
          %s99 = sshll.u32 %s91, 4
          %s100 = int_to_ptr.vmem [resolvable:$true] %s99
          %105 = dma.hbm_to_vmem [thread:$0]  %s98, 16384, %s100, %s88, 512, 512, 32
        $region20: #{tpu_custom_call.1} parent=15 // pred_fallthru
          _
      $region16: #{tpu_custom_call.1} parent=5 // pred_fallthru
        _
      %p106 = scmp.le.s32.totalorder 1, %s13
      %p107 = scmp.lt.s32.totalorder %s13, 3
      %p108 = pnand %p106, %p107
      %p109 = pneg %p108
      // Predicated region
      $region21: #{tpu_custom_call.1} parent=5 // pred_check
        _
      $region22: #{tpu_custom_call.1} parent=5 // pred_check_branch
        %111 = sbr.rel (%p108) target = $region24
      $region23: #{tpu_custom_call.1} parent=5 // pred_region
        %s112 = ssub.s32 %s13, 1
        %s113 = sand.u32 %s26, 1
        %s114 = scalar_lea.sflag [#allocation3], %s113
        %s115 = sand.u32 %s26, 1
        %s116 = smul.addr %s115, 1024
        %s117 = scalar_lea.vmem [#allocation2], %s116
        // Predicated region
        $region25: #{tpu_custom_call.1} parent=23 // pred_check
          %p118 = pneg %p39
        $region26: #{tpu_custom_call.1} parent=23 // pred_check_branch
          %120 = sbr.rel (%p118) target = $region28
        $region27: #{tpu_custom_call.1} parent=23 // pred_region
          %121 = dma.done %s114, 16384
        $region28: #{tpu_custom_call.1} parent=23 // pred_fallthru
          _
        %s122 = sand.u32 %s26, 1
        %s123 = scalar_lea.sflag [#allocation3], %s122
        %s124 = sand.u32 %s26, 1
        %s125 = smul.addr %s124, 1024
        %s126 = scalar_lea.vmem [#allocation2], %s125
        %p127 = pneg %p39
        %p128 = pneg %p36
        %p129 = pneg %p65
        %p130 = pneg %p62
        %s131 = sand.u32 %s52, 1
        %s132 = scalar_lea.sflag [#allocation4], %s131
        %s133 = sand.u32 %s52, 1
        %s134 = smul.addr %s133, 1024
        %s135 = scalar_lea.vmem [#allocation5], %s134
        %s136 = smul.u32 32, %s18
        %s137 = smul.u32 32, %s18
        %v138 = vld [vmem:[%s117] sm:$0xff]
        %v139 = vld [vmem:[%s117 + $0x8] sm:$0xff]
        %v140 = vld [vmem:[%s117 + $0x10] sm:$0xff]
        %v141 = vld [vmem:[%s117 + $0x18] sm:$0xff]
        %v142 = vld [vmem:[%s117 + $0x20] sm:$0xff]
        %v143 = vld [vmem:[%s117 + $0x28] sm:$0xff]
        %v144 = vld [vmem:[%s117 + $0x30] sm:$0xff]
        %v145 = vld [vmem:[%s117 + $0x38] sm:$0xff]
        %v146 = vld [vmem:[%s117 + $0x40] sm:$0xff]
        %v147 = vld [vmem:[%s117 + $0x48] sm:$0xff]
        %v148 = vld [vmem:[%s117 + $0x50] sm:$0xff]
        %v149 = vld [vmem:[%s117 + $0x58] sm:$0xff]
        %v150 = vld [vmem:[%s117 + $0x60] sm:$0xff]
        %v151 = vld [vmem:[%s117 + $0x68] sm:$0xff]
        %v152 = vld [vmem:[%s117 + $0x70] sm:$0xff]
        %v153 = vld [vmem:[%s117 + $0x78] sm:$0xff]
        %v154 = vld [vmem:[%s117 + $0x80] sm:$0xff]
        %v155 = vld [vmem:[%s117 + $0x88] sm:$0xff]
        %v156 = vld [vmem:[%s117 + $0x90] sm:$0xff]
        %v157 = vld [vmem:[%s117 + $0x98] sm:$0xff]
        %v158 = vld [vmem:[%s117 + $0xa0] sm:$0xff]
        %v159 = vld [vmem:[%s117 + $0xa8] sm:$0xff]
        %v160 = vld [vmem:[%s117 + $0xb0] sm:$0xff]
        %v161 = vld [vmem:[%s117 + $0xb8] sm:$0xff]
        %v162 = vld [vmem:[%s117 + $0xc0] sm:$0xff]
        %v163 = vld [vmem:[%s117 + $0xc8] sm:$0xff]
        %v164 = vld [vmem:[%s117 + $0xd0] sm:$0xff]
        %v165 = vld [vmem:[%s117 + $0xd8] sm:$0xff]
        %v166 = vld [vmem:[%s117 + $0xe0] sm:$0xff]
        %v167 = vld [vmem:[%s117 + $0xe8] sm:$0xff]
        %v168 = vld [vmem:[%s117 + $0xf0] sm:$0xff]
        %v169 = vld [vmem:[%s117 + $0xf8] sm:$0xff]
        %v170 = vld [vmem:[%s117 + $0x100] sm:$0xff]
        %v171 = vld [vmem:[%s117 + $0x108] sm:$0xff]
        %v172 = vld [vmem:[%s117 + $0x110] sm:$0xff]
        %v173 = vld [vmem:[%s117 + $0x118] sm:$0xff]
        %v174 = vld [vmem:[%s117 + $0x120] sm:$0xff]
        %v175 = vld [vmem:[%s117 + $0x128] sm:$0xff]
        %v176 = vld [vmem:[%s117 + $0x130] sm:$0xff]
        %v177 = vld [vmem:[%s117 + $0x138] sm:$0xff]
        %v178 = vld [vmem:[%s117 + $0x140] sm:$0xff]
        %v179 = vld [vmem:[%s117 + $0x148] sm:$0xff]
        %v180 = vld [vmem:[%s117 + $0x150] sm:$0xff]
        %v181 = vld [vmem:[%s117 + $0x158] sm:$0xff]
        %v182 = vld [vmem:[%s117 + $0x160] sm:$0xff]
        %v183 = vld [vmem:[%s117 + $0x168] sm:$0xff]
        %v184 = vld [vmem:[%s117 + $0x170] sm:$0xff]
        %v185 = vld [vmem:[%s117 + $0x178] sm:$0xff]
        %v186 = vld [vmem:[%s117 + $0x180] sm:$0xff]
        %v187 = vld [vmem:[%s117 + $0x188] sm:$0xff]
        %v188 = vld [vmem:[%s117 + $0x190] sm:$0xff]
        %v189 = vld [vmem:[%s117 + $0x198] sm:$0xff]
        %v190 = vld [vmem:[%s117 + $0x1a0] sm:$0xff]
        %v191 = vld [vmem:[%s117 + $0x1a8] sm:$0xff]
        %v192 = vld [vmem:[%s117 + $0x1b0] sm:$0xff]
        %v193 = vld [vmem:[%s117 + $0x1b8] sm:$0xff]
        %v194 = vld [vmem:[%s117 + $0x1c0] sm:$0xff]
        %v195 = vld [vmem:[%s117 + $0x1c8] sm:$0xff]
        %v196 = vld [vmem:[%s117 + $0x1d0] sm:$0xff]
        %v197 = vld [vmem:[%s117 + $0x1d8] sm:$0xff]
        %v198 = vld [vmem:[%s117 + $0x1e0] sm:$0xff]
        %v199 = vld [vmem:[%s117 + $0x1e8] sm:$0xff]
        %v200 = vld [vmem:[%s117 + $0x1f0] sm:$0xff]
        %v201 = vld [vmem:[%s117 + $0x1f8] sm:$0xff]
        %v202 = vld [vmem:[%s117 + $0x200] sm:$0xff]
        %v203 = vld [vmem:[%s117 + $0x208] sm:$0xff]
        %v204 = vld [vmem:[%s117 + $0x210] sm:$0xff]
        %v205 = vld [vmem:[%s117 + $0x218] sm:$0xff]
        %v206 = vld [vmem:[%s117 + $0x220] sm:$0xff]
        %v207 = vld [vmem:[%s117 + $0x228] sm:$0xff]
        %v208 = vld [vmem:[%s117 + $0x230] sm:$0xff]
        %v209 = vld [vmem:[%s117 + $0x238] sm:$0xff]
        %v210 = vld [vmem:[%s117 + $0x240] sm:$0xff]
        %v211 = vld [vmem:[%s117 + $0x248] sm:$0xff]
        %v212 = vld [vmem:[%s117 + $0x250] sm:$0xff]
        %v213 = vld [vmem:[%s117 + $0x258] sm:$0xff]
        %v214 = vld [vmem:[%s117 + $0x260] sm:$0xff]
        %v215 = vld [vmem:[%s117 + $0x268] sm:$0xff]
        %v216 = vld [vmem:[%s117 + $0x270] sm:$0xff]
        %v217 = vld [vmem:[%s117 + $0x278] sm:$0xff]
        %v218 = vld [vmem:[%s117 + $0x280] sm:$0xff]
        %v219 = vld [vmem:[%s117 + $0x288] sm:$0xff]
        %v220 = vld [vmem:[%s117 + $0x290] sm:$0xff]
        %v221 = vld [vmem:[%s117 + $0x298] sm:$0xff]
        %v222 = vld [vmem:[%s117 + $0x2a0] sm:$0xff]
        %v223 = vld [vmem:[%s117 + $0x2a8] sm:$0xff]
        %v224 = vld [vmem:[%s117 + $0x2b0] sm:$0xff]
        %v225 = vld [vmem:[%s117 + $0x2b8] sm:$0xff]
        %v226 = vld [vmem:[%s117 + $0x2c0] sm:$0xff]
        %v227 = vld [vmem:[%s117 + $0x2c8] sm:$0xff]
        %v228 = vld [vmem:[%s117 + $0x2d0] sm:$0xff]
        %v229 = vld [vmem:[%s117 + $0x2d8] sm:$0xff]
        %v230 = vld [vmem:[%s117 + $0x2e0] sm:$0xff]
        %v231 = vld [vmem:[%s117 + $0x2e8] sm:$0xff]
        %v232 = vld [vmem:[%s117 + $0x2f0] sm:$0xff]
        %v233 = vld [vmem:[%s117 + $0x2f8] sm:$0xff]
        %v234 = vld [vmem:[%s117 + $0x300] sm:$0xff]
        %v235 = vld [vmem:[%s117 + $0x308] sm:$0xff]
        %v236 = vld [vmem:[%s117 + $0x310] sm:$0xff]
        %v237 = vld [vmem:[%s117 + $0x318] sm:$0xff]
        %v238 = vld [vmem:[%s117 + $0x320] sm:$0xff]
        %v239 = vld [vmem:[%s117 + $0x328] sm:$0xff]
        %v240 = vld [vmem:[%s117 + $0x330] sm:$0xff]
        %v241 = vld [vmem:[%s117 + $0x338] sm:$0xff]
        %v242 = vld [vmem:[%s117 + $0x340] sm:$0xff]
        %v243 = vld [vmem:[%s117 + $0x348] sm:$0xff]
        %v244 = vld [vmem:[%s117 + $0x350] sm:$0xff]
        %v245 = vld [vmem:[%s117 + $0x358] sm:$0xff]
        %v246 = vld [vmem:[%s117 + $0x360] sm:$0xff]
        %v247 = vld [vmem:[%s117 + $0x368] sm:$0xff]
        %v248 = vld [vmem:[%s117 + $0x370] sm:$0xff]
        %v249 = vld [vmem:[%s117 + $0x378] sm:$0xff]
        %v250 = vld [vmem:[%s117 + $0x380] sm:$0xff]
        %v251 = vld [vmem:[%s117 + $0x388] sm:$0xff]
        %v252 = vld [vmem:[%s117 + $0x390] sm:$0xff]
        %v253 = vld [vmem:[%s117 + $0x398] sm:$0xff]
        %v254 = vld [vmem:[%s117 + $0x3a0] sm:$0xff]
        %v255 = vld [vmem:[%s117 + $0x3a8] sm:$0xff]
        %v256 = vld [vmem:[%s117 + $0x3b0] sm:$0xff]
        %v257 = vld [vmem:[%s117 + $0x3b8] sm:$0xff]
        %v258 = vld [vmem:[%s117 + $0x3c0] sm:$0xff]
        %v259 = vld [vmem:[%s117 + $0x3c8] sm:$0xff]
        %v260 = vld [vmem:[%s117 + $0x3d0] sm:$0xff]
        %v261 = vld [vmem:[%s117 + $0x3d8] sm:$0xff]
        %v262 = vld [vmem:[%s117 + $0x3e0] sm:$0xff]
        %v263 = vld [vmem:[%s117 + $0x3e8] sm:$0xff]
        %v264 = vld [vmem:[%s117 + $0x3f0] sm:$0xff]
        %v265 = vld [vmem:[%s117 + $0x3f8] sm:$0xff]
        %v266 = vand.u32 2147483647, %v138
        %v267 = vand.u32 2147483647, %v139
        %v268 = vand.u32 2147483647, %v140
        %v269 = vand.u32 2147483647, %v141
        %v270 = vand.u32 2147483647, %v142
        %v271 = vand.u32 2147483647, %v143
        %v272 = vand.u32 2147483647, %v144
        %v273 = vand.u32 2147483647, %v145
        %v274 = vand.u32 2147483647, %v146
        %v275 = vand.u32 2147483647, %v147
        %v276 = vand.u32 2147483647, %v148
        %v277 = vand.u32 2147483647, %v149
        %v278 = vand.u32 2147483647, %v150
        %v279 = vand.u32 2147483647, %v151
        %v280 = vand.u32 2147483647, %v152
        %v281 = vand.u32 2147483647, %v153
        %v282 = vand.u32 2147483647, %v154
        %v283 = vand.u32 2147483647, %v155
        %v284 = vand.u32 2147483647, %v156
        %v285 = vand.u32 2147483647, %v157
        %v286 = vand.u32 2147483647, %v158
        %v287 = vand.u32 2147483647, %v159
        %v288 = vand.u32 2147483647, %v160
        %v289 = vand.u32 2147483647, %v161
        %v290 = vand.u32 2147483647, %v162
        %v291 = vand.u32 2147483647, %v163
        %v292 = vand.u32 2147483647, %v164
        %v293 = vand.u32 2147483647, %v165
        %v294 = vand.u32 2147483647, %v166
        %v295 = vand.u32 2147483647, %v167
        %v296 = vand.u32 2147483647, %v168
        %v297 = vand.u32 2147483647, %v169
        %v298 = vand.u32 2147483647, %v170
        %v299 = vand.u32 2147483647, %v171
        %v300 = vand.u32 2147483647, %v172
        %v301 = vand.u32 2147483647, %v173
        %v302 = vand.u32 2147483647, %v174
        %v303 = vand.u32 2147483647, %v175
        %v304 = vand.u32 2147483647, %v176
        %v305 = vand.u32 2147483647, %v177
        %v306 = vand.u32 2147483647, %v178
        %v307 = vand.u32 2147483647, %v179
        %v308 = vand.u32 2147483647, %v180
        %v309 = vand.u32 2147483647, %v181
        %v310 = vand.u32 2147483647, %v182
        %v311 = vand.u32 2147483647, %v183
        %v312 = vand.u32 2147483647, %v184
        %v313 = vand.u32 2147483647, %v185
        %v314 = vand.u32 2147483647, %v186
        %v315 = vand.u32 2147483647, %v187
        %v316 = vand.u32 2147483647, %v188
        %v317 = vand.u32 2147483647, %v189
        %v318 = vand.u32 2147483647, %v190
        %v319 = vand.u32 2147483647, %v191
        %v320 = vand.u32 2147483647, %v192
        %v321 = vand.u32 2147483647, %v193
        %v322 = vand.u32 2147483647, %v194
        %v323 = vand.u32 2147483647, %v195
        %v324 = vand.u32 2147483647, %v196
        %v325 = vand.u32 2147483647, %v197
        %v326 = vand.u32 2147483647, %v198
        %v327 = vand.u32 2147483647, %v199
        %v328 = vand.u32 2147483647, %v200
        %v329 = vand.u32 2147483647, %v201
        %v330 = vand.u32 2147483647, %v202
        %v331 = vand.u32 2147483647, %v203
        %v332 = vand.u32 2147483647, %v204
        %v333 = vand.u32 2147483647, %v205
        %v334 = vand.u32 2147483647, %v206
        %v335 = vand.u32 2147483647, %v207
        %v336 = vand.u32 2147483647, %v208
        %v337 = vand.u32 2147483647, %v209
        %v338 = vand.u32 2147483647, %v210
        %v339 = vand.u32 2147483647, %v211
        %v340 = vand.u32 2147483647, %v212
        %v341 = vand.u32 2147483647, %v213
        %v342 = vand.u32 2147483647, %v214
        %v343 = vand.u32 2147483647, %v215
        %v344 = vand.u32 2147483647, %v216
        %v345 = vand.u32 2147483647, %v217
        %v346 = vand.u32 2147483647, %v218
        %v347 = vand.u32 2147483647, %v219
        %v348 = vand.u32 2147483647, %v220
        %v349 = vand.u32 2147483647, %v221
        %v350 = vand.u32 2147483647, %v222
        %v351 = vand.u32 2147483647, %v223
        %v352 = vand.u32 2147483647, %v224
        %v353 = vand.u32 2147483647, %v225
        %v354 = vand.u32 2147483647, %v226
        %v355 = vand.u32 2147483647, %v227
        %v356 = vand.u32 2147483647, %v228
        %v357 = vand.u32 2147483647, %v229
        %v358 = vand.u32 2147483647, %v230
        %v359 = vand.u32 2147483647, %v231
        %v360 = vand.u32 2147483647, %v232
        %v361 = vand.u32 2147483647, %v233
        %v362 = vand.u32 2147483647, %v234
        %v363 = vand.u32 2147483647, %v235
        %v364 = vand.u32 2147483647, %v236
        %v365 = vand.u32 2147483647, %v237
        %v366 = vand.u32 2147483647, %v238
        %v367 = vand.u32 2147483647, %v239
        %v368 = vand.u32 2147483647, %v240
        %v369 = vand.u32 2147483647, %v241
        %v370 = vand.u32 2147483647, %v242
        %v371 = vand.u32 2147483647, %v243
        %v372 = vand.u32 2147483647, %v244
        %v373 = vand.u32 2147483647, %v245
        %v374 = vand.u32 2147483647, %v246
        %v375 = vand.u32 2147483647, %v247
        %v376 = vand.u32 2147483647, %v248
        %v377 = vand.u32 2147483647, %v249
        %v378 = vand.u32 2147483647, %v250
        %v379 = vand.u32 2147483647, %v251
        %v380 = vand.u32 2147483647, %v252
        %v381 = vand.u32 2147483647, %v253
        %v382 = vand.u32 2147483647, %v254
        %v383 = vand.u32 2147483647, %v255
        %v384 = vand.u32 2147483647, %v256
        %v385 = vand.u32 2147483647, %v257
        %v386 = vand.u32 2147483647, %v258
        %v387 = vand.u32 2147483647, %v259
        %v388 = vand.u32 2147483647, %v260
        %v389 = vand.u32 2147483647, %v261
        %v390 = vand.u32 2147483647, %v262
        %v391 = vand.u32 2147483647, %v263
        %v392 = vand.u32 2147483647, %v264
        %v393 = vand.u32 2147483647, %v265
        %v394 = vadd.f32 %v266, 1.0
        %v395 = vadd.f32 %v267, 1.0
        %v396 = vadd.f32 %v268, 1.0
        %v397 = vadd.f32 %v269, 1.0
        %v398 = vadd.f32 %v270, 1.0
        %v399 = vadd.f32 %v271, 1.0
        %v400 = vadd.f32 %v272, 1.0
        %v401 = vadd.f32 %v273, 1.0
        %v402 = vadd.f32 %v274, 1.0
        %v403 = vadd.f32 %v275, 1.0
        %v404 = vadd.f32 %v276, 1.0
        %v405 = vadd.f32 %v277, 1.0
        %v406 = vadd.f32 %v278, 1.0
        %v407 = vadd.f32 %v279, 1.0
        %v408 = vadd.f32 %v280, 1.0
        %v409 = vadd.f32 %v281, 1.0
        %v410 = vadd.f32 %v282, 1.0
        %v411 = vadd.f32 %v283, 1.0
        %v412 = vadd.f32 %v284, 1.0
        %v413 = vadd.f32 %v285, 1.0
        %v414 = vadd.f32 %v286, 1.0
        %v415 = vadd.f32 %v287, 1.0
        %v416 = vadd.f32 %v288, 1.0
        %v417 = vadd.f32 %v289, 1.0
        %v418 = vadd.f32 %v290, 1.0
        %v419 = vadd.f32 %v291, 1.0
        %v420 = vadd.f32 %v292, 1.0
        %v421 = vadd.f32 %v293, 1.0
        %v422 = vadd.f32 %v294, 1.0
        %v423 = vadd.f32 %v295, 1.0
        %v424 = vadd.f32 %v296, 1.0
        %v425 = vadd.f32 %v297, 1.0
        %v426 = vadd.f32 %v298, 1.0
        %v427 = vadd.f32 %v299, 1.0
        %v428 = vadd.f32 %v300, 1.0
        %v429 = vadd.f32 %v301, 1.0
        %v430 = vadd.f32 %v302, 1.0
        %v431 = vadd.f32 %v303, 1.0
        %v432 = vadd.f32 %v304, 1.0
        %v433 = vadd.f32 %v305, 1.0
        %v434 = vadd.f32 %v306, 1.0
        %v435 = vadd.f32 %v307, 1.0
        %v436 = vadd.f32 %v308, 1.0
        %v437 = vadd.f32 %v309, 1.0
        %v438 = vadd.f32 %v310, 1.0
        %v439 = vadd.f32 %v311, 1.0
        %v440 = vadd.f32 %v312, 1.0
        %v441 = vadd.f32 %v313, 1.0
        %v442 = vadd.f32 %v314, 1.0
        %v443 = vadd.f32 %v315, 1.0
        %v444 = vadd.f32 %v316, 1.0
        %v445 = vadd.f32 %v317, 1.0
        %v446 = vadd.f32 %v318, 1.0
        %v447 = vadd.f32 %v319, 1.0
        %v448 = vadd.f32 %v320, 1.0
        %v449 = vadd.f32 %v321, 1.0
        %v450 = vadd.f32 %v322, 1.0
        %v451 = vadd.f32 %v323, 1.0
        %v452 = vadd.f32 %v324, 1.0
        %v453 = vadd.f32 %v325, 1.0
        %v454 = vadd.f32 %v326, 1.0
        %v455 = vadd.f32 %v327, 1.0
        %v456 = vadd.f32 %v328, 1.0
        %v457 = vadd.f32 %v329, 1.0
        %v458 = vadd.f32 %v330, 1.0
        %v459 = vadd.f32 %v331, 1.0
        %v460 = vadd.f32 %v332, 1.0
        %v461 = vadd.f32 %v333, 1.0
        %v462 = vadd.f32 %v334, 1.0
        %v463 = vadd.f32 %v335, 1.0
        %v464 = vadd.f32 %v336, 1.0
        %v465 = vadd.f32 %v337, 1.0
        %v466 = vadd.f32 %v338, 1.0
        %v467 = vadd.f32 %v339, 1.0
        %v468 = vadd.f32 %v340, 1.0
        %v469 = vadd.f32 %v341, 1.0
        %v470 = vadd.f32 %v342, 1.0
        %v471 = vadd.f32 %v343, 1.0
        %v472 = vadd.f32 %v344, 1.0
        %v473 = vadd.f32 %v345, 1.0
        %v474 = vadd.f32 %v346, 1.0
        %v475 = vadd.f32 %v347, 1.0
        %v476 = vadd.f32 %v348, 1.0
        %v477 = vadd.f32 %v349, 1.0
        %v478 = vadd.f32 %v350, 1.0
        %v479 = vadd.f32 %v351, 1.0
        %v480 = vadd.f32 %v352, 1.0
        %v481 = vadd.f32 %v353, 1.0
        %v482 = vadd.f32 %v354, 1.0
        %v483 = vadd.f32 %v355, 1.0
        %v484 = vadd.f32 %v356, 1.0
        %v485 = vadd.f32 %v357, 1.0
        %v486 = vadd.f32 %v358, 1.0
        %v487 = vadd.f32 %v359, 1.0
        %v488 = vadd.f32 %v360, 1.0
        %v489 = vadd.f32 %v361, 1.0
        %v490 = vadd.f32 %v362, 1.0
        %v491 = vadd.f32 %v363, 1.0
        %v492 = vadd.f32 %v364, 1.0
        %v493 = vadd.f32 %v365, 1.0
        %v494 = vadd.f32 %v366, 1.0
        %v495 = vadd.f32 %v367, 1.0
        %v496 = vadd.f32 %v368, 1.0
        %v497 = vadd.f32 %v369, 1.0
        %v498 = vadd.f32 %v370, 1.0
        %v499 = vadd.f32 %v371, 1.0
        %v500 = vadd.f32 %v372, 1.0
        %v501 = vadd.f32 %v373, 1.0
        %v502 = vadd.f32 %v374, 1.0
        %v503 = vadd.f32 %v375, 1.0
        %v504 = vadd.f32 %v376, 1.0
        %v505 = vadd.f32 %v377, 1.0
        %v506 = vadd.f32 %v378, 1.0
        %v507 = vadd.f32 %v379, 1.0
        %v508 = vadd.f32 %v380, 1.0
        %v509 = vadd.f32 %v381, 1.0
        %v510 = vadd.f32 %v382, 1.0
        %v511 = vadd.f32 %v383, 1.0
        %v512 = vadd.f32 %v384, 1.0
        %v513 = vadd.f32 %v385, 1.0
        %v514 = vadd.f32 %v386, 1.0
        %v515 = vadd.f32 %v387, 1.0
        %v516 = vadd.f32 %v388, 1.0
        %v517 = vadd.f32 %v389, 1.0
        %v518 = vadd.f32 %v390, 1.0
        %v519 = vadd.f32 %v391, 1.0
        %v520 = vadd.f32 %v392, 1.0
        %v521 = vadd.f32 %v393, 1.0
        %v522 = vlog2.pop %v394
        %v523 = vmul.f32 %v522, 0.6931472
        %v524 = vlog2.pop %v395
        %v525 = vmul.f32 %v524, 0.6931472
        %v526 = vlog2.pop %v396
        %v527 = vmul.f32 %v526, 0.6931472
        %v528 = vlog2.pop %v397
        %v529 = vmul.f32 %v528, 0.6931472
        %v530 = vlog2.pop %v398
        %v531 = vmul.f32 %v530, 0.6931472
        %v532 = vlog2.pop %v399
        %v533 = vmul.f32 %v532, 0.6931472
        %v534 = vlog2.pop %v400
        %v535 = vmul.f32 %v534, 0.6931472
        %v536 = vlog2.pop %v401
        %v537 = vmul.f32 %v536, 0.6931472
        %v538 = vlog2.pop %v402
        %v539 = vmul.f32 %v538, 0.6931472
        %v540 = vlog2.pop %v403
        %v541 = vmul.f32 %v540, 0.6931472
        %v542 = vlog2.pop %v404
        %v543 = vmul.f32 %v542, 0.6931472
        %v544 = vlog2.pop %v405
        %v545 = vmul.f32 %v544, 0.6931472
        %v546 = vlog2.pop %v406
        %v547 = vmul.f32 %v546, 0.6931472
        %v548 = vlog2.pop %v407
        %v549 = vmul.f32 %v548, 0.6931472
        %v550 = vlog2.pop %v408
        %v551 = vmul.f32 %v550, 0.6931472
        %v552 = vlog2.pop %v409
        %v553 = vmul.f32 %v552, 0.6931472
        %v554 = vlog2.pop %v410
        %v555 = vmul.f32 %v554, 0.6931472
        %v556 = vlog2.pop %v411
        %v557 = vmul.f32 %v556, 0.6931472
        %v558 = vlog2.pop %v412
        %v559 = vmul.f32 %v558, 0.6931472
        %v560 = vlog2.pop %v413
        %v561 = vmul.f32 %v560, 0.6931472
        %v562 = vlog2.pop %v414
        %v563 = vmul.f32 %v562, 0.6931472
        %v564 = vlog2.pop %v415
        %v565 = vmul.f32 %v564, 0.6931472
        %v566 = vlog2.pop %v416
        %v567 = vmul.f32 %v566, 0.6931472
        %v568 = vlog2.pop %v417
        %v569 = vmul.f32 %v568, 0.6931472
        %v570 = vlog2.pop %v418
        %v571 = vmul.f32 %v570, 0.6931472
        %v572 = vlog2.pop %v419
        %v573 = vmul.f32 %v572, 0.6931472
        %v574 = vlog2.pop %v420
        %v575 = vmul.f32 %v574, 0.6931472
        %v576 = vlog2.pop %v421
        %v577 = vmul.f32 %v576, 0.6931472
        %v578 = vlog2.pop %v422
        %v579 = vmul.f32 %v578, 0.6931472
        %v580 = vlog2.pop %v423
        %v581 = vmul.f32 %v580, 0.6931472
        %v582 = vlog2.pop %v424
        %v583 = vmul.f32 %v582, 0.6931472
        %v584 = vlog2.pop %v425
        %v585 = vmul.f32 %v584, 0.6931472
        %v586 = vlog2.pop %v426
        %v587 = vmul.f32 %v586, 0.6931472
        %v588 = vlog2.pop %v427
        %v589 = vmul.f32 %v588, 0.6931472
        %v590 = vlog2.pop %v428
        %v591 = vmul.f32 %v590, 0.6931472
        %v592 = vlog2.pop %v429
        %v593 = vmul.f32 %v592, 0.6931472
        %v594 = vlog2.pop %v430
        %v595 = vmul.f32 %v594, 0.6931472
        %v596 = vlog2.pop %v431
        %v597 = vmul.f32 %v596, 0.6931472
        %v598 = vlog2.pop %v432
        %v599 = vmul.f32 %v598, 0.6931472
        %v600 = vlog2.pop %v433
        %v601 = vmul.f32 %v600, 0.6931472
        %v602 = vlog2.pop %v434
        %v603 = vmul.f32 %v602, 0.6931472
        %v604 = vlog2.pop %v435
        %v605 = vmul.f32 %v604, 0.6931472
        %v606 = vlog2.pop %v436
        %v607 = vmul.f32 %v606, 0.6931472
        %v608 = vlog2.pop %v437
        %v609 = vmul.f32 %v608, 0.6931472
        %v610 = vlog2.pop %v438
        %v611 = vmul.f32 %v610, 0.6931472
        %v612 = vlog2.pop %v439
        %v613 = vmul.f32 %v612, 0.6931472
        %v614 = vlog2.pop %v440
        %v615 = vmul.f32 %v614, 0.6931472
        %v616 = vlog2.pop %v441
        %v617 = vmul.f32 %v616, 0.6931472
        %v618 = vlog2.pop %v442
        %v619 = vmul.f32 %v618, 0.6931472
        %v620 = vlog2.pop %v443
        %v621 = vmul.f32 %v620, 0.6931472
        %v622 = vlog2.pop %v444
        %v623 = vmul.f32 %v622, 0.6931472
        %v624 = vlog2.pop %v445
        %v625 = vmul.f32 %v624, 0.6931472
        %v626 = vlog2.pop %v446
        %v627 = vmul.f32 %v626, 0.6931472
        %v628 = vlog2.pop %v447
        %v629 = vmul.f32 %v628, 0.6931472
        %v630 = vlog2.pop %v448
        %v631 = vmul.f32 %v630, 0.6931472
        %v632 = vlog2.pop %v449
        %v633 = vmul.f32 %v632, 0.6931472
        %v634 = vlog2.pop %v450
        %v635 = vmul.f32 %v634, 0.6931472
        %v636 = vlog2.pop %v451
        %v637 = vmul.f32 %v636, 0.6931472
        %v638 = vlog2.pop %v452
        %v639 = vmul.f32 %v638, 0.6931472
        %v640 = vlog2.pop %v453
        %v641 = vmul.f32 %v640, 0.6931472
        %v642 = vlog2.pop %v454
        %v643 = vmul.f32 %v642, 0.6931472
        %v644 = vlog2.pop %v455
        %v645 = vmul.f32 %v644, 0.6931472
        %v646 = vlog2.pop %v456
        %v647 = vmul.f32 %v646, 0.6931472
        %v648 = vlog2.pop %v457
        %v649 = vmul.f32 %v648, 0.6931472
        %v650 = vlog2.pop %v458
        %v651 = vmul.f32 %v650, 0.6931472
        %v652 = vlog2.pop %v459
        %v653 = vmul.f32 %v652, 0.6931472
        %v654 = vlog2.pop %v460
        %v655 = vmul.f32 %v654, 0.6931472
        %v656 = vlog2.pop %v461
        %v657 = vmul.f32 %v656, 0.6931472
        %v658 = vlog2.pop %v462
        %v659 = vmul.f32 %v658, 0.6931472
        %v660 = vlog2.pop %v463
        %v661 = vmul.f32 %v660, 0.6931472
        %v662 = vlog2.pop %v464
        %v663 = vmul.f32 %v662, 0.6931472
        %v664 = vlog2.pop %v465
        %v665 = vmul.f32 %v664, 0.6931472
        %v666 = vlog2.pop %v466
        %v667 = vmul.f32 %v666, 0.6931472
        %v668 = vlog2.pop %v467
        %v669 = vmul.f32 %v668, 0.6931472
        %v670 = vlog2.pop %v468
        %v671 = vmul.f32 %v670, 0.6931472
        %v672 = vlog2.pop %v469
        %v673 = vmul.f32 %v672, 0.6931472
        %v674 = vlog2.pop %v470
        %v675 = vmul.f32 %v674, 0.6931472
        %v676 = vlog2.pop %v471
        %v677 = vmul.f32 %v676, 0.6931472
        %v678 = vlog2.pop %v472
        %v679 = vmul.f32 %v678, 0.6931472
        %v680 = vlog2.pop %v473
        %v681 = vmul.f32 %v680, 0.6931472
        %v682 = vlog2.pop %v474
        %v683 = vmul.f32 %v682, 0.6931472
        %v684 = vlog2.pop %v475
        %v685 = vmul.f32 %v684, 0.6931472
        %v686 = vlog2.pop %v476
        %v687 = vmul.f32 %v686, 0.6931472
        %v688 = vlog2.pop %v477
        %v689 = vmul.f32 %v688, 0.6931472
        %v690 = vlog2.pop %v478
        %v691 = vmul.f32 %v690, 0.6931472
        %v692 = vlog2.pop %v479
        %v693 = vmul.f32 %v692, 0.6931472
        %v694 = vlog2.pop %v480
        %v695 = vmul.f32 %v694, 0.6931472
        %v696 = vlog2.pop %v481
        %v697 = vmul.f32 %v696, 0.6931472
        %v698 = vlog2.pop %v482
        %v699 = vmul.f32 %v698, 0.6931472
        %v700 = vlog2.pop %v483
        %v701 = vmul.f32 %v700, 0.6931472
        %v702 = vlog2.pop %v484
        %v703 = vmul.f32 %v702, 0.6931472
        %v704 = vlog2.pop %v485
        %v705 = vmul.f32 %v704, 0.6931472
        %v706 = vlog2.pop %v486
        %v707 = vmul.f32 %v706, 0.6931472
        %v708 = vlog2.pop %v487
        %v709 = vmul.f32 %v708, 0.6931472
        %v710 = vlog2.pop %v488
        %v711 = vmul.f32 %v710, 0.6931472
        %v712 = vlog2.pop %v489
        %v713 = vmul.f32 %v712, 0.6931472
        %v714 = vlog2.pop %v490
        %v715 = vmul.f32 %v714, 0.6931472
        %v716 = vlog2.pop %v491
        %v717 = vmul.f32 %v716, 0.6931472
        %v718 = vlog2.pop %v492
        %v719 = vmul.f32 %v718, 0.6931472
        %v720 = vlog2.pop %v493
        %v721 = vmul.f32 %v720, 0.6931472
        %v722 = vlog2.pop %v494
        %v723 = vmul.f32 %v722, 0.6931472
        %v724 = vlog2.pop %v495
        %v725 = vmul.f32 %v724, 0.6931472
        %v726 = vlog2.pop %v496
        %v727 = vmul.f32 %v726, 0.6931472
        %v728 = vlog2.pop %v497
        %v729 = vmul.f32 %v728, 0.6931472
        %v730 = vlog2.pop %v498
        %v731 = vmul.f32 %v730, 0.6931472
        %v732 = vlog2.pop %v499
        %v733 = vmul.f32 %v732, 0.6931472
        %v734 = vlog2.pop %v500
        %v735 = vmul.f32 %v734, 0.6931472
        %v736 = vlog2.pop %v501
        %v737 = vmul.f32 %v736, 0.6931472
        %v738 = vlog2.pop %v502
        %v739 = vmul.f32 %v738, 0.6931472
        %v740 = vlog2.pop %v503
        %v741 = vmul.f32 %v740, 0.6931472
        %v742 = vlog2.pop %v504
        %v743 = vmul.f32 %v742, 0.6931472
        %v744 = vlog2.pop %v505
        %v745 = vmul.f32 %v744, 0.6931472
        %v746 = vlog2.pop %v506
        %v747 = vmul.f32 %v746, 0.6931472
        %v748 = vlog2.pop %v507
        %v749 = vmul.f32 %v748, 0.6931472
        %v750 = vlog2.pop %v508
        %v751 = vmul.f32 %v750, 0.6931472
        %v752 = vlog2.pop %v509
        %v753 = vmul.f32 %v752, 0.6931472
        %v754 = vlog2.pop %v510
        %v755 = vmul.f32 %v754, 0.6931472
        %v756 = vlog2.pop %v511
        %v757 = vmul.f32 %v756, 0.6931472
        %v758 = vlog2.pop %v512
        %v759 = vmul.f32 %v758, 0.6931472
        %v760 = vlog2.pop %v513
        %v761 = vmul.f32 %v760, 0.6931472
        %v762 = vlog2.pop %v514
        %v763 = vmul.f32 %v762, 0.6931472
        %v764 = vlog2.pop %v515
        %v765 = vmul.f32 %v764, 0.6931472
        %v766 = vlog2.pop %v516
        %v767 = vmul.f32 %v766, 0.6931472
        %v768 = vlog2.pop %v517
        %v769 = vmul.f32 %v768, 0.6931472
        %v770 = vlog2.pop %v518
        %v771 = vmul.f32 %v770, 0.6931472
        %v772 = vlog2.pop %v519
        %v773 = vmul.f32 %v772, 0.6931472
        %v774 = vlog2.pop %v520
        %v775 = vmul.f32 %v774, 0.6931472
        %v776 = vlog2.pop %v521
        %v777 = vmul.f32 %v776, 0.6931472
        %v778 = vmul.f32 %v523, 0.4342945
        %v779 = vmul.f32 %v525, 0.4342945
        %v780 = vmul.f32 %v527, 0.4342945
        %v781 = vmul.f32 %v529, 0.4342945
        %v782 = vmul.f32 %v531, 0.4342945
        %v783 = vmul.f32 %v533, 0.4342945
        %v784 = vmul.f32 %v535, 0.4342945
        %v785 = vmul.f32 %v537, 0.4342945
        %v786 = vmul.f32 %v539, 0.4342945
        %v787 = vmul.f32 %v541, 0.4342945
        %v788 = vmul.f32 %v543, 0.4342945
        %v789 = vmul.f32 %v545, 0.4342945
        %v790 = vmul.f32 %v547, 0.4342945
        %v791 = vmul.f32 %v549, 0.4342945
        %v792 = vmul.f32 %v551, 0.4342945
        %v793 = vmul.f32 %v553, 0.4342945
        %v794 = vmul.f32 %v555, 0.4342945
        %v795 = vmul.f32 %v557, 0.4342945
        %v796 = vmul.f32 %v559, 0.4342945
        %v797 = vmul.f32 %v561, 0.4342945
        %v798 = vmul.f32 %v563, 0.4342945
        %v799 = vmul.f32 %v565, 0.4342945
        %v800 = vmul.f32 %v567, 0.4342945
        %v801 = vmul.f32 %v569, 0.4342945
        %v802 = vmul.f32 %v571, 0.4342945
        %v803 = vmul.f32 %v573, 0.4342945
        %v804 = vmul.f32 %v575, 0.4342945
        %v805 = vmul.f32 %v577, 0.4342945
        %v806 = vmul.f32 %v579, 0.4342945
        %v807 = vmul.f32 %v581, 0.4342945
        %v808 = vmul.f32 %v583, 0.4342945
        %v809 = vmul.f32 %v585, 0.4342945
        %v810 = vmul.f32 %v587, 0.4342945
        %v811 = vmul.f32 %v589, 0.4342945
        %v812 = vmul.f32 %v591, 0.4342945
        %v813 = vmul.f32 %v593, 0.4342945
        %v814 = vmul.f32 %v595, 0.4342945
        %v815 = vmul.f32 %v597, 0.4342945
        %v816 = vmul.f32 %v599, 0.4342945
        %v817 = vmul.f32 %v601, 0.4342945
        %v818 = vmul.f32 %v603, 0.4342945
        %v819 = vmul.f32 %v605, 0.4342945
        %v820 = vmul.f32 %v607, 0.4342945
        %v821 = vmul.f32 %v609, 0.4342945
        %v822 = vmul.f32 %v611, 0.4342945
        %v823 = vmul.f32 %v613, 0.4342945
        %v824 = vmul.f32 %v615, 0.4342945
        %v825 = vmul.f32 %v617, 0.4342945
        %v826 = vmul.f32 %v619, 0.4342945
        %v827 = vmul.f32 %v621, 0.4342945
        %v828 = vmul.f32 %v623, 0.4342945
        %v829 = vmul.f32 %v625, 0.4342945
        %v830 = vmul.f32 %v627, 0.4342945
        %v831 = vmul.f32 %v629, 0.4342945
        %v832 = vmul.f32 %v631, 0.4342945
        %v833 = vmul.f32 %v633, 0.4342945
        %v834 = vmul.f32 %v635, 0.4342945
        %v835 = vmul.f32 %v637, 0.4342945
        %v836 = vmul.f32 %v639, 0.4342945
        %v837 = vmul.f32 %v641, 0.4342945
        %v838 = vmul.f32 %v643, 0.4342945
        %v839 = vmul.f32 %v645, 0.4342945
        %v840 = vmul.f32 %v647, 0.4342945
        %v841 = vmul.f32 %v649, 0.4342945
        %v842 = vmul.f32 %v651, 0.4342945
        %v843 = vmul.f32 %v653, 0.4342945
        %v844 = vmul.f32 %v655, 0.4342945
        %v845 = vmul.f32 %v657, 0.4342945
        %v846 = vmul.f32 %v659, 0.4342945
        %v847 = vmul.f32 %v661, 0.4342945
        %v848 = vmul.f32 %v663, 0.4342945
        %v849 = vmul.f32 %v665, 0.4342945
        %v850 = vmul.f32 %v667, 0.4342945
        %v851 = vmul.f32 %v669, 0.4342945
        %v852 = vmul.f32 %v671, 0.4342945
        %v853 = vmul.f32 %v673, 0.4342945
        %v854 = vmul.f32 %v675, 0.4342945
        %v855 = vmul.f32 %v677, 0.4342945
        %v856 = vmul.f32 %v679, 0.4342945
        %v857 = vmul.f32 %v681, 0.4342945
        %v858 = vmul.f32 %v683, 0.4342945
        %v859 = vmul.f32 %v685, 0.4342945
        %v860 = vmul.f32 %v687, 0.4342945
        %v861 = vmul.f32 %v689, 0.4342945
        %v862 = vmul.f32 %v691, 0.4342945
        %v863 = vmul.f32 %v693, 0.4342945
        %v864 = vmul.f32 %v695, 0.4342945
        %v865 = vmul.f32 %v697, 0.4342945
        %v866 = vmul.f32 %v699, 0.4342945
        %v867 = vmul.f32 %v701, 0.4342945
        %v868 = vmul.f32 %v703, 0.4342945
        %v869 = vmul.f32 %v705, 0.4342945
        %v870 = vmul.f32 %v707, 0.4342945
        %v871 = vmul.f32 %v709, 0.4342945
        %v872 = vmul.f32 %v711, 0.4342945
        %v873 = vmul.f32 %v713, 0.4342945
        %v874 = vmul.f32 %v715, 0.4342945
        %v875 = vmul.f32 %v717, 0.4342945
        %v876 = vmul.f32 %v719, 0.4342945
        %v877 = vmul.f32 %v721, 0.4342945
        %v878 = vmul.f32 %v723, 0.4342945
        %v879 = vmul.f32 %v725, 0.4342945
        %v880 = vmul.f32 %v727, 0.4342945
        %v881 = vmul.f32 %v729, 0.4342945
        %v882 = vmul.f32 %v731, 0.4342945
        %v883 = vmul.f32 %v733, 0.4342945
        %v884 = vmul.f32 %v735, 0.4342945
        %v885 = vmul.f32 %v737, 0.4342945
        %v886 = vmul.f32 %v739, 0.4342945
        %v887 = vmul.f32 %v741, 0.4342945
        %v888 = vmul.f32 %v743, 0.4342945
        %v889 = vmul.f32 %v745, 0.4342945
        %v890 = vmul.f32 %v747, 0.4342945
        %v891 = vmul.f32 %v749, 0.4342945
        %v892 = vmul.f32 %v751, 0.4342945
        %v893 = vmul.f32 %v753, 0.4342945
        %v894 = vmul.f32 %v755, 0.4342945
        %v895 = vmul.f32 %v757, 0.4342945
        %v896 = vmul.f32 %v759, 0.4342945
        %v897 = vmul.f32 %v761, 0.4342945
        %v898 = vmul.f32 %v763, 0.4342945
        %v899 = vmul.f32 %v765, 0.4342945
        %v900 = vmul.f32 %v767, 0.4342945
        %v901 = vmul.f32 %v769, 0.4342945
        %v902 = vmul.f32 %v771, 0.4342945
        %v903 = vmul.f32 %v773, 0.4342945
        %v904 = vmul.f32 %v775, 0.4342945
        %v905 = vmul.f32 %v777, 0.4342945
        %906 = vst [vmem:[%s135] sm:$0xff] %v778
        %907 = vst [vmem:[%s135 + $0x8] sm:$0xff] %v779
        %908 = vst [vmem:[%s135 + $0x10] sm:$0xff] %v780
        %909 = vst [vmem:[%s135 + $0x18] sm:$0xff] %v781
        %910 = vst [vmem:[%s135 + $0x20] sm:$0xff] %v782
        %911 = vst [vmem:[%s135 + $0x28] sm:$0xff] %v783
        %912 = vst [vmem:[%s135 + $0x30] sm:$0xff] %v784
        %913 = vst [vmem:[%s135 + $0x38] sm:$0xff] %v785
        %914 = vst [vmem:[%s135 + $0x40] sm:$0xff] %v786
        %915 = vst [vmem:[%s135 + $0x48] sm:$0xff] %v787
        %916 = vst [vmem:[%s135 + $0x50] sm:$0xff] %v788
        %917 = vst [vmem:[%s135 + $0x58] sm:$0xff] %v789
        %918 = vst [vmem:[%s135 + $0x60] sm:$0xff] %v790
        %919 = vst [vmem:[%s135 + $0x68] sm:$0xff] %v791
        %920 = vst [vmem:[%s135 + $0x70] sm:$0xff] %v792
        %921 = vst [vmem:[%s135 + $0x78] sm:$0xff] %v793
        %922 = vst [vmem:[%s135 + $0x80] sm:$0xff] %v794
        %923 = vst [vmem:[%s135 + $0x88] sm:$0xff] %v795
        %924 = vst [vmem:[%s135 + $0x90] sm:$0xff] %v796
        %925 = vst [vmem:[%s135 + $0x98] sm:$0xff] %v797
        %926 = vst [vmem:[%s135 + $0xa0] sm:$0xff] %v798
        %927 = vst [vmem:[%s135 + $0xa8] sm:$0xff] %v799
        %928 = vst [vmem:[%s135 + $0xb0] sm:$0xff] %v800
        %929 = vst [vmem:[%s135 + $0xb8] sm:$0xff] %v801
        %930 = vst [vmem:[%s135 + $0xc0] sm:$0xff] %v802
        %931 = vst [vmem:[%s135 + $0xc8] sm:$0xff] %v803
        %932 = vst [vmem:[%s135 + $0xd0] sm:$0xff] %v804
        %933 = vst [vmem:[%s135 + $0xd8] sm:$0xff] %v805
        %934 = vst [vmem:[%s135 + $0xe0] sm:$0xff] %v806
        %935 = vst [vmem:[%s135 + $0xe8] sm:$0xff] %v807
        %936 = vst [vmem:[%s135 + $0xf0] sm:$0xff] %v808
        %937 = vst [vmem:[%s135 + $0xf8] sm:$0xff] %v809
        %938 = vst [vmem:[%s135 + $0x100] sm:$0xff] %v810
        %939 = vst [vmem:[%s135 + $0x108] sm:$0xff] %v811
        %940 = vst [vmem:[%s135 + $0x110] sm:$0xff] %v812
        %941 = vst [vmem:[%s135 + $0x118] sm:$0xff] %v813
        %942 = vst [vmem:[%s135 + $0x120] sm:$0xff] %v814
        %943 = vst [vmem:[%s135 + $0x128] sm:$0xff] %v815
        %944 = vst [vmem:[%s135 + $0x130] sm:$0xff] %v816
        %945 = vst [vmem:[%s135 + $0x138] sm:$0xff] %v817
        %946 = vst [vmem:[%s135 + $0x140] sm:$0xff] %v818
        %947 = vst [vmem:[%s135 + $0x148] sm:$0xff] %v819
        %948 = vst [vmem:[%s135 + $0x150] sm:$0xff] %v820
        %949 = vst [vmem:[%s135 + $0x158] sm:$0xff] %v821
        %950 = vst [vmem:[%s135 + $0x160] sm:$0xff] %v822
        %951 = vst [vmem:[%s135 + $0x168] sm:$0xff] %v823
        %952 = vst [vmem:[%s135 + $0x170] sm:$0xff] %v824
        %953 = vst [vmem:[%s135 + $0x178] sm:$0xff] %v825
        %954 = vst [vmem:[%s135 + $0x180] sm:$0xff] %v826
        %955 = vst [vmem:[%s135 + $0x188] sm:$0xff] %v827
        %956 = vst [vmem:[%s135 + $0x190] sm:$0xff] %v828
        %957 = vst [vmem:[%s135 + $0x198] sm:$0xff] %v829
        %958 = vst [vmem:[%s135 + $0x1a0] sm:$0xff] %v830
        %959 = vst [vmem:[%s135 + $0x1a8] sm:$0xff] %v831
        %960 = vst [vmem:[%s135 + $0x1b0] sm:$0xff] %v832
        %961 = vst [vmem:[%s135 + $0x1b8] sm:$0xff] %v833
        %962 = vst [vmem:[%s135 + $0x1c0] sm:$0xff] %v834
        %963 = vst [vmem:[%s135 + $0x1c8] sm:$0xff] %v835
        %964 = vst [vmem:[%s135 + $0x1d0] sm:$0xff] %v836
        %965 = vst [vmem:[%s135 + $0x1d8] sm:$0xff] %v837
        %966 = vst [vmem:[%s135 + $0x1e0] sm:$0xff] %v838
        %967 = vst [vmem:[%s135 + $0x1e8] sm:$0xff] %v839
        %968 = vst [vmem:[%s135 + $0x1f0] sm:$0xff] %v840
        %969 = vst [vmem:[%s135 + $0x1f8] sm:$0xff] %v841
        %970 = vst [vmem:[%s135 + $0x200] sm:$0xff] %v842
        %971 = vst [vmem:[%s135 + $0x208] sm:$0xff] %v843
        %972 = vst [vmem:[%s135 + $0x210] sm:$0xff] %v844
        %973 = vst [vmem:[%s135 + $0x218] sm:$0xff] %v845
        %974 = vst [vmem:[%s135 + $0x220] sm:$0xff] %v846
        %975 = vst [vmem:[%s135 + $0x228] sm:$0xff] %v847
        %976 = vst [vmem:[%s135 + $0x230] sm:$0xff] %v848
        %977 = vst [vmem:[%s135 + $0x238] sm:$0xff] %v849
        %978 = vst [vmem:[%s135 + $0x240] sm:$0xff] %v850
        %979 = vst [vmem:[%s135 + $0x248] sm:$0xff] %v851
        %980 = vst [vmem:[%s135 + $0x250] sm:$0xff] %v852
        %981 = vst [vmem:[%s135 + $0x258] sm:$0xff] %v853
        %982 = vst [vmem:[%s135 + $0x260] sm:$0xff] %v854
        %983 = vst [vmem:[%s135 + $0x268] sm:$0xff] %v855
        %984 = vst [vmem:[%s135 + $0x270] sm:$0xff] %v856
        %985 = vst [vmem:[%s135 + $0x278] sm:$0xff] %v857
        %986 = vst [vmem:[%s135 + $0x280] sm:$0xff] %v858
        %987 = vst [vmem:[%s135 + $0x288] sm:$0xff] %v859
        %988 = vst [vmem:[%s135 + $0x290] sm:$0xff] %v860
        %989 = vst [vmem:[%s135 + $0x298] sm:$0xff] %v861
        %990 = vst [vmem:[%s135 + $0x2a0] sm:$0xff] %v862
        %991 = vst [vmem:[%s135 + $0x2a8] sm:$0xff] %v863
        %992 = vst [vmem:[%s135 + $0x2b0] sm:$0xff] %v864
        %993 = vst [vmem:[%s135 + $0x2b8] sm:$0xff] %v865
        %994 = vst [vmem:[%s135 + $0x2c0] sm:$0xff] %v866
        %995 = vst [vmem:[%s135 + $0x2c8] sm:$0xff] %v867
        %996 = vst [vmem:[%s135 + $0x2d0] sm:$0xff] %v868
        %997 = vst [vmem:[%s135 + $0x2d8] sm:$0xff] %v869
        %998 = vst [vmem:[%s135 + $0x2e0] sm:$0xff] %v870
        %999 = vst [vmem:[%s135 + $0x2e8] sm:$0xff] %v871
        %1000 = vst [vmem:[%s135 + $0x2f0] sm:$0xff] %v872
        %1001 = vst [vmem:[%s135 + $0x2f8] sm:$0xff] %v873
        %1002 = vst [vmem:[%s135 + $0x300] sm:$0xff] %v874
        %1003 = vst [vmem:[%s135 + $0x308] sm:$0xff] %v875
        %1004 = vst [vmem:[%s135 + $0x310] sm:$0xff] %v876
        %1005 = vst [vmem:[%s135 + $0x318] sm:$0xff] %v877
        %1006 = vst [vmem:[%s135 + $0x320] sm:$0xff] %v878
        %1007 = vst [vmem:[%s135 + $0x328] sm:$0xff] %v879
        %1008 = vst [vmem:[%s135 + $0x330] sm:$0xff] %v880
        %1009 = vst [vmem:[%s135 + $0x338] sm:$0xff] %v881
        %1010 = vst [vmem:[%s135 + $0x340] sm:$0xff] %v882
        %1011 = vst [vmem:[%s135 + $0x348] sm:$0xff] %v883
        %1012 = vst [vmem:[%s135 + $0x350] sm:$0xff] %v884
        %1013 = vst [vmem:[%s135 + $0x358] sm:$0xff] %v885
        %1014 = vst [vmem:[%s135 + $0x360] sm:$0xff] %v886
        %1015 = vst [vmem:[%s135 + $0x368] sm:$0xff] %v887
        %1016 = vst [vmem:[%s135 + $0x370] sm:$0xff] %v888
        %1017 = vst [vmem:[%s135 + $0x378] sm:$0xff] %v889
        %1018 = vst [vmem:[%s135 + $0x380] sm:$0xff] %v890
        %1019 = vst [vmem:[%s135 + $0x388] sm:$0xff] %v891
        %1020 = vst [vmem:[%s135 + $0x390] sm:$0xff] %v892
        %1021 = vst [vmem:[%s135 + $0x398] sm:$0xff] %v893
        %1022 = vst [vmem:[%s135 + $0x3a0] sm:$0xff] %v894
        %1023 = vst [vmem:[%s135 + $0x3a8] sm:$0xff] %v895
        %1024 = vst [vmem:[%s135 + $0x3b0] sm:$0xff] %v896
        %1025 = vst [vmem:[%s135 + $0x3b8] sm:$0xff] %v897
        %1026 = vst [vmem:[%s135 + $0x3c0] sm:$0xff] %v898
        %1027 = vst [vmem:[%s135 + $0x3c8] sm:$0xff] %v899
        %1028 = vst [vmem:[%s135 + $0x3d0] sm:$0xff] %v900
        %1029 = vst [vmem:[%s135 + $0x3d8] sm:$0xff] %v901
        %1030 = vst [vmem:[%s135 + $0x3e0] sm:$0xff] %v902
        %1031 = vst [vmem:[%s135 + $0x3e8] sm:$0xff] %v903
        %1032 = vst [vmem:[%s135 + $0x3f0] sm:$0xff] %v904
        %1033 = vst [vmem:[%s135 + $0x3f8] sm:$0xff] %v905
        %s1034 = sand.u32 %s52, 1
        %s1035 = scalar_lea.sflag [#allocation4], %s1034
        %s1036 = sand.u32 %s52, 1
        %s1037 = smul.addr %s1036, 1024
        %s1038 = scalar_lea.vmem [#allocation5], %s1037
        // Predicated region
        $region29: #{tpu_custom_call.1} parent=23 // pred_check
          %p1039 = pneg %p62
        $region30: #{tpu_custom_call.1} parent=23 // pred_check_branch
          %1041 = sbr.rel (%p1039) target = $region32
        $region31: #{tpu_custom_call.1} parent=23 // pred_region
          %s1042 = smul.u32 32, %s18
          %s1044 = ssub.s32 16384, 16384
          %1045 = vsyncadd %s1035, %s1044
          %s1046 = smul.addr %s1042, 4
          %s1047 = smul.addr %s1046, 128
          %s1048 = scalar_lea.hbm %s1, %s1047
          %s1049 = sshll.u32 %s1038, 4
          %s1050 = int_to_ptr.vmem [resolvable:$true] %s1049
          %1055 = dma.vmem_to_hbm [thread:$0]  %s1050, 16384, %s1048, %s1035, 512, 512, 32
        $region32: #{tpu_custom_call.1} parent=23 // pred_fallthru
          _
      $region24: #{tpu_custom_call.1} parent=5 // pred_fallthru
        _
      %p1056 = scmp.le.s32.totalorder 2, %s13
      // Predicated region
      $region33: #{tpu_custom_call.1} parent=5 // pred_check
        %p1057 = pneg %p1056
      $region34: #{tpu_custom_call.1} parent=5 // pred_check_branch
        %1059 = sbr.rel (%p1057) target = $region36
      $region35: #{tpu_custom_call.1} parent=5 // pred_region
        %s1060 = ssub.s32 %s13, 2
        // Predicated region
        $region37: #{tpu_custom_call.1} parent=35 // pred_check
          %p1061 = pneg %p68
        $region38: #{tpu_custom_call.1} parent=35 // pred_check_branch
          %1063 = sbr.rel (%p1061) target = $region40
        $region39: #{tpu_custom_call.1} parent=35 // pred_region
          %s1064 = sand.u32 %s53, 1
          %s1065 = scalar_lea.sflag [#allocation4], %s1064
          %s1066 = sand.u32 %s53, 1
          %s1067 = smul.addr %s1066, 1024
          %s1068 = scalar_lea.vmem [#allocation5], %s1067
          %1069 = dma.done %s1065, 16384
        $region40: #{tpu_custom_call.1} parent=35 // pred_fallthru
          _
      $region36: #{tpu_custom_call.1} parent=5 // pred_fallthru
        _
    $region6: #{tpu_custom_call.1} parent=1 // loop_footer
      %s17 = sadd.s32 1, %s13
    $region7: #{tpu_custom_call.1} parent=1 // loop_footer_branch
      %12 = sbr.rel target = $region3
    $region8: #{tpu_custom_call.1} parent=1 // loop_exit
      _
    %1070 = vsyncpa [#allocation3], 1
    %s1071 = scalar_lea.sflag [#allocation3], 1
    %1072 = vsyncpa %s1071, 1
    %1073 = vsyncpa [#allocation4], 1
    %s1074 = scalar_lea.sflag [#allocation4], 1
    %1075 = vsyncpa %s1074, 1

</llo_original>
